<compile_context>
chip_gen: v5e
topology: v5e:2x2
jax: 0.10.0
libtpu: 0.0.40
codegen_flags: <defaults>
</compile_context>

<pallas_src>
import functools
import math

import jax
import jax.numpy as jnp
from jax.experimental import pallas as pl
from jax.experimental.pallas import tpu as pltpu


def _round_up(x: int, m: int) -> int:
    return ((x + m - 1) // m) * m


def _head_layout(act_size: int):
    """Fused-head layout: mean at cols [0, act), log_std at cols [half, half+act)."""
    half = _round_up(act_size, 64)          # std column offset (64 when act<=64)
    slab = _round_up(2 * half, 128)         # total lanes, multiple of 128
    return half, slab


def _choose_tb(batch: int, block_b: int) -> int:
    """Batch tile: big for HBM roofline, but >=4 grid steps when batch allows (v7x)."""
    b8 = _round_up(max(batch, 1), 8)
    tb = min(_round_up(max(block_b, 8), 8), b8)
    if b8 >= 4 * 128:                        # batch big enough for >=4 tiles of 128
        while tb > 128 and pl.cdiv(b8, tb) < 4:
            tb //= 2
        tb = _round_up(tb, 8)
    return tb


def _choose_row_chunk(tb: int) -> int:
    """In-kernel row sub-tile: bounds f32 z live range when tb > 256."""
    if tb <= 256:
        return tb
    for rc in (256, 128, 64, 32, 16, 8):
        if tb % rc == 0:
            return rc
    return tb


def _resident_spec(shape):
    """Constant-index, VMEM-resident operand; single-buffered when supported."""
    index_map = lambda i: (0,) * len(shape)
    if hasattr(pl, "Buffered"):
        try:
            return pl.BlockSpec(shape, index_map, pipeline_mode=pl.Buffered(1))
        except Exception:  # older jax without pipeline_mode: fall back to default
            pass
    return pl.BlockSpec(shape, index_map)


# ---------------------------------------------------------------------------
# Kernel
# ---------------------------------------------------------------------------
def _policy_kernel(x_ref, w1_ref, b1_ref, w2_ref, b2_ref, wh_ref, bh_ref,
                   out_ref, *, std_col0: int, row_chunk: int):
    tb, slab = out_ref.shape
    num_chunks = tb // row_chunk
    # Column mask selecting the log_std half of the fused output slab.
    is_std = jax.lax.broadcasted_iota(jnp.int32, (1, slab), 1) >= std_col0

    def compute(r0):
        # hidden layer 1: Linear + ReLU  (bf16 MXU operands, f32 accumulate)
        x = x_ref[pl.ds(r0, row_chunk), :].astype(jnp.bfloat16)
        h1 = jnp.dot(x, w1_ref[...], preferred_element_type=jnp.float32) + b1_ref[...]
        h1 = jnp.maximum(h1, 0.0).astype(jnp.bfloat16)

        # hidden layer 2: Linear + ReLU
        h2 = jnp.dot(h1, w2_ref[...], preferred_element_type=jnp.float32) + b2_ref[...]
        h2 = jnp.maximum(h2, 0.0).astype(jnp.bfloat16)

        # fused heads: one matmul -> [rc, slab]; mean cols stay linear,
        # std cols get exp(clip(., -20, 2)).  clip bounds exp so the unused
        # (mean) branch of the where never overflows.
        z = jnp.dot(h2, wh_ref[...], preferred_element_type=jnp.float32) + bh_ref[...]
        std_val = jnp.exp(jnp.clip(z, -20.0, 2.0))
        out_ref[pl.ds(r0, row_chunk), :] = jnp.where(is_std, std_val, z).astype(out_ref.dtype)

    if num_chunks == 1:
        compute(0)
    else:
        def body(c, carry):
            compute(pl.multiple_of(c * row_chunk, row_chunk))
            return carry
        jax.lax.fori_loop(0, num_chunks, body, 0, unroll=False)


# ---------------------------------------------------------------------------
# Wrapper
# ---------------------------------------------------------------------------
def policy_net_forward(stat, packed, act_size, *, block_b: int = 512,
                       out_dtype=jnp.float32):
    """stat: [B, stat_size] f32; packed: dict from pack_policy_params."""
    B, S = stat.shape
    H = packed["w1"].shape[1]
    half, slab = _head_layout(act_size)
    assert packed["wh"].shape == (H, slab), "packed params / act_size mismatch"

    tb = _choose_tb(B, block_b)
    B_pad = _round_up(B, tb)
    if B_pad != B:
        stat = jnp.pad(stat, ((0, B_pad - B), (0, 0)))
    grid = (B_pad // tb,)
    row_chunk = _choose_row_chunk(tb)

    kernel = functools.partial(_policy_kernel, std_col0=half, row_chunk=row_chunk)

    out_bytes = int(jnp.dtype(out_dtype).itemsize)
    flops = 2 * B_pad * (S * H + H * H + H * slab)
    transcendentals = B_pad * slab
    bytes_accessed = (
        B_pad * S * 4                              # stat in (f32)
        + (S * H + H * H + H * slab) * 2           # bf16 weights
        + (2 * H + slab) * 4                       # f32 biases
        + B_pad * slab * out_bytes                 # fused mean|std out
    )

    out = pl.pallas_call(
        kernel,
        out_shape=jax.ShapeDtypeStruct((B_pad, slab), out_dtype),
        grid=grid,
        in_specs=[
            pl.BlockSpec((tb, S), lambda i: (i, 0)),   # stat (batch-tiled, pipelined)
            _resident_spec((S, H)),                    # w1
            _resident_spec((1, H)),                    # b1
            _resident_spec((H, H)),                    # w2
            _resident_spec((1, H)),                    # b2
            _resident_spec((H, slab)),                 # fused head weight
            _resident_spec((1, slab)),                 # fused head bias
        ],
        out_specs=pl.BlockSpec((tb, slab), lambda i: (i, 0)),
        compiler_params=pltpu.CompilerParams(
            dimension_semantics=("parallel",),
        ),
        cost_estimate=pl.CostEstimate(
            flops=flops,
            transcendentals=transcendentals,
            bytes_accessed=bytes_accessed,
        ),
    )(stat, packed["w1"], packed["b1"], packed["w2"], packed["b2"],
      packed["wh"], packed["bh"])

    mean = out[:B, :act_size]
    std = out[:B, half:half + act_size]
    return mean, std


# ---------------------------------------------------------------------------
# Params (match torch xavier_uniform_ weights + zero biases)
# ---------------------------------------------------------------------------
def _xavier_uniform(key, fan_in, fan_out, gain=1.0):
    bound = gain * math.sqrt(6.0 / (fan_in + fan_out))
    return jax.random.uniform(key, (fan_in, fan_out), jnp.float32, -bound, bound)


def init_policy_params(key, stat_size, hidden_size, act_size):
    k1, k2, k3, k4 = jax.random.split(key, 4)
    return {
        "w1": _xavier_uniform(k1, stat_size, hidden_size),
        "b1": jnp.zeros((1, hidden_size), jnp.float32),
        "w2": _xavier_uniform(k2, hidden_size, hidden_size),
        "b2": jnp.zeros((1, hidden_size), jnp.float32),
        "wm": _xavier_uniform(k3, hidden_size, act_size),
        "bm": jnp.zeros((1, act_size), jnp.float32),
        "ws": _xavier_uniform(k4, hidden_size, act_size),
        "bs": jnp.zeros((1, act_size), jnp.float32),
    }


def pack_policy_params(p, act_size):
    """Kernel layout: bf16 weights; mean/log_std heads fused into one lane slab."""
    hidden = p["w2"].shape[0]
    half, slab = _head_layout(act_size)

    wh = jnp.zeros((hidden, slab), jnp.float32)
    wh = wh.at[:, :act_size].set(p["wm"])
    wh = wh.at[:, half:half + act_size].set(p["ws"])
    bh = jnp.zeros((1, slab), jnp.float32)
    bh = bh.at[:, :act_size].set(p["bm"])
    bh = bh.at[:, half:half + act_size].set(p["bs"])

    return {
        "w1": p["w1"].astype(jnp.bfloat16),
        "b1": p["b1"],
        "w2": p["w2"].astype(jnp.bfloat16),
        "b2": p["b2"],
        "wh": wh.astype(jnp.bfloat16),
        "bh": bh,
    }


# ---------------------------------------------------------------------------
# References
# ---------------------------------------------------------------------------
def policy_net_forward_ref_bf16(stat, p):
    """Same math as the kernel (bf16 MXU operands, f32 accumulate/elementwise)."""
    bf = jnp.bfloat16

    def bdot(a, w):
        return jnp.dot(a.astype(bf), w.astype(bf), preferred_element_type=jnp.float32)

    h1 = jnp.maximum(bdot(stat, p["w1"]) + p["b1"], 0.0)
    h2 = jnp.maximum(bdot(h1, p["w2"]) + p["b2"], 0.0)
    mean = bdot(h2, p["wm"]) + p["bm"]
    std = jnp.exp(jnp.clip(bdot(h2, p["ws"]) + p["bs"], -20.0, 2.0))
    return mean, std


def policy_net_forward_ref_f32(stat, p):
    """Pure f32 reference (matches the original PyTorch module numerically)."""
    h1 = jnp.maximum(stat @ p["w1"] + p["b1"], 0.0)
    h2 = jnp.maximum(h1 @ p["w2"] + p["b2"], 0.0)
    mean = h2 @ p["wm"] + p["bm"]
    std = jnp.exp(jnp.clip(h2 @ p["ws"] + p["bs"], -20.0, 2.0))
    return mean, std


# ---------------------------------------------------------------------------
if __name__ == "__main__":
    key = jax.random.PRNGKey(0)
    k_param, k_stat, k_stat_odd = jax.random.split(key, 3)

    batch = 256
    stat_size = 16
    hidden_size = 32
    act_size = 8

    params = init_policy_params(k_param, stat_size, hidden_size, act_size)
    packed = pack_policy_params(params, act_size)
    stat = jax.random.normal(k_stat, (batch, stat_size), jnp.float32)

    fwd = jax.jit(policy_net_forward, static_argnums=(2,))
    mean, std = fwd(stat, packed, act_size)
    jax.block_until_ready((mean, std))

    mean_bf, std_bf = policy_net_forward_ref_bf16(stat, params)
    mean_f32, std_f32 = policy_net_forward_ref_f32(stat, params)

    assert mean.shape == (batch, act_size) and std.shape == (batch, act_size)
    assert mean.dtype == jnp.float32 and std.dtype == jnp.float32
    # tight check against the bf16-operand / f32-accumulate reference
    assert jnp.allclose(mean, mean_bf, atol=1e-3, rtol=1e-3)
    assert jnp.allclose(std, std_bf, atol=1e-3, rtol=1e-3)
    # loose sanity check against the original full-f32 semantics
    assert jnp.allclose(mean, mean_f32, atol=1e-1, rtol=1e-1)
    assert jnp.allclose(std, std_f32, atol=1e-1, rtol=1e-1)
    assert bool(jnp.all(std > 0.0))

    # Optional bf16 output path (halves the dominant HBM write stream).
    fwd_bf16 = jax.jit(
        functools.partial(policy_net_forward, out_dtype=jnp.bfloat16),
        static_argnums=(2,))
    mean16, std16 = fwd_bf16(stat, packed, act_size)
    jax.block_until_ready((mean16, std16))
    assert mean16.dtype == jnp.bfloat16 and std16.dtype == jnp.bfloat16
    assert jnp.allclose(mean16.astype(jnp.float32), mean_bf, atol=3e-2, rtol=3e-2)
    assert jnp.allclose(std16.astype(jnp.float32), std_bf, atol=3e-2, rtol=3e-2)
    assert bool(jnp.all(std16.astype(jnp.float32) > 0.0))

    # Odd batch exercises the batch-padding path.
    stat_odd = jax.random.normal(k_stat_odd, (37, stat_size), jnp.float32)
    mean_o, std_o = fwd(stat_odd, packed, act_size)
    jax.block_until_ready((mean_o, std_o))
    mean_o_ref, std_o_ref = policy_net_forward_ref_bf16(stat_odd, params)
    assert mean_o.shape == (37, act_size) and std_o.shape == (37, act_size)
    assert jnp.allclose(mean_o, mean_o_ref, atol=1e-3, rtol=1e-3)
    assert jnp.allclose(std_o, std_o_ref, atol=1e-3, rtol=1e-3)

    print("KERNEL_OK")
</pallas_src>

<mosaic_0001>
module attributes {stable_mosaic.version = 11 : i64} {
  func.func @_policy_kernel(%arg0: i32, %arg1: memref<256x16xf32, #tpu.memory_space<vmem>>, %arg2: memref<16x32xbf16, #tpu.memory_space<vmem>>, %arg3: memref<1x32xf32, #tpu.memory_space<vmem>>, %arg4: memref<32x32xbf16, #tpu.memory_space<vmem>>, %arg5: memref<1x32xf32, #tpu.memory_space<vmem>>, %arg6: memref<32x128xbf16, #tpu.memory_space<vmem>>, %arg7: memref<1x128xf32, #tpu.memory_space<vmem>>, %arg8: memref<256x128xf32, #tpu.memory_space<vmem>>) attributes {dimension_semantics = [#tpu.dimension_semantics<parallel>], iteration_bounds = array<i64: 1>, scalar_prefetch = 0 : i64, scratch_operands = 0 : i64, tpu.core_type = #tpu.core_type<tc>, window_params = [{transform_indices = @transform_0, window_bounds = array<i64: 256, 16>}, {pipeline_mode = #tpu.pipeline_mode<synchronous>, transform_indices = @transform_1, window_bounds = array<i64: 16, 32>}, {pipeline_mode = #tpu.pipeline_mode<synchronous>, transform_indices = @transform_2, window_bounds = array<i64: 1, 32>}, {pipeline_mode = #tpu.pipeline_mode<synchronous>, transform_indices = @transform_3, window_bounds = array<i64: 32, 32>}, {pipeline_mode = #tpu.pipeline_mode<synchronous>, transform_indices = @transform_4, window_bounds = array<i64: 1, 32>}, {pipeline_mode = #tpu.pipeline_mode<synchronous>, transform_indices = @transform_5, window_bounds = array<i64: 32, 128>}, {pipeline_mode = #tpu.pipeline_mode<synchronous>, transform_indices = @transform_6, window_bounds = array<i64: 1, 128>}, {transform_indices = @transform_7, window_bounds = array<i64: 256, 128>}]} {
    %0 = tpu.iota {dimensions = array<i32: 1>} : vector<1x128xi32>
    %c64_i32 = arith.constant 64 : i32
    %1 = vector.broadcast %c64_i32 : i32 to vector<1x128xi32>
    %2 = arith.cmpi sge, %0, %1 : vector<1x128xi32>
    %c0 = arith.constant 0 : index
    %c0_0 = arith.constant 0 : index
    %3 = vector.load %arg1[%c0, %c0_0] : memref<256x16xf32, #tpu.memory_space<vmem>>, vector<256x16xf32>
    %4 = arith.truncf %3 : vector<256x16xf32> to vector<256x16xbf16>
    %c0_1 = arith.constant 0 : index
    %c0_2 = arith.constant 0 : index
    %5 = vector.load %arg2[%c0_1, %c0_2] : memref<16x32xbf16, #tpu.memory_space<vmem>>, vector<16x32xbf16>
    %cst = arith.constant dense<0.000000e+00> : vector<256x32xf32>
    %6 = tpu.matmul %4, %5, %cst {dimension_numbers = #tpu.dot_dimension_numbers<[1], [0], [0], [1], [0, 0, 1, 1], [], []>} : vector<256x16xbf16>, vector<16x32xbf16>, vector<256x32xf32> -> vector<256x32xf32>
    %c0_3 = arith.constant 0 : index
    %c0_4 = arith.constant 0 : index
    %7 = vector.load %arg3[%c0_3, %c0_4] : memref<1x32xf32, #tpu.memory_space<vmem>>, vector<1x32xf32>
    %8 = vector.broadcast %7 : vector<1x32xf32> to vector<256x32xf32>
    %9 = arith.addf %6, %8 : vector<256x32xf32>
    %cst_5 = arith.constant 0.000000e+00 : f32
    %10 = vector.broadcast %cst_5 : f32 to vector<256x32xf32>
    %11 = arith.maximumf %9, %10 : vector<256x32xf32>
    %12 = arith.truncf %11 : vector<256x32xf32> to vector<256x32xbf16>
    %c0_6 = arith.constant 0 : index
    %c0_7 = arith.constant 0 : index
    %13 = vector.load %arg4[%c0_6, %c0_7] : memref<32x32xbf16, #tpu.memory_space<vmem>>, vector<32x32xbf16>
    %cst_8 = arith.constant dense<0.000000e+00> : vector<256x32xf32>
    %14 = tpu.matmul %12, %13, %cst_8 {dimension_numbers = #tpu.dot_dimension_numbers<[1], [0], [0], [1], [0, 0, 1, 1], [], []>} : vector<256x32xbf16>, vector<32x32xbf16>, vector<256x32xf32> -> vector<256x32xf32>
    %c0_9 = arith.constant 0 : index
    %c0_10 = arith.constant 0 : index
    %15 = vector.load %arg5[%c0_9, %c0_10] : memref<1x32xf32, #tpu.memory_space<vmem>>, vector<1x32xf32>
    %16 = vector.broadcast %15 : vector<1x32xf32> to vector<256x32xf32>
    %17 = arith.addf %14, %16 : vector<256x32xf32>
    %cst_11 = arith.constant 0.000000e+00 : f32
    %18 = vector.broadcast %cst_11 : f32 to vector<256x32xf32>
    %19 = arith.maximumf %17, %18 : vector<256x32xf32>
    %20 = arith.truncf %19 : vector<256x32xf32> to vector<256x32xbf16>
    %c0_12 = arith.constant 0 : index
    %c0_13 = arith.constant 0 : index
    %21 = vector.load %arg6[%c0_12, %c0_13] : memref<32x128xbf16, #tpu.memory_space<vmem>>, vector<32x128xbf16>
    %cst_14 = arith.constant dense<0.000000e+00> : vector<256x128xf32>
    %22 = tpu.matmul %20, %21, %cst_14 {dimension_numbers = #tpu.dot_dimension_numbers<[1], [0], [0], [1], [0, 0, 1, 1], [], []>} : vector<256x32xbf16>, vector<32x128xbf16>, vector<256x128xf32> -> vector<256x128xf32>
    %c0_15 = arith.constant 0 : index
    %c0_16 = arith.constant 0 : index
    %23 = vector.load %arg7[%c0_15, %c0_16] : memref<1x128xf32, #tpu.memory_space<vmem>>, vector<1x128xf32>
    %24 = vector.broadcast %23 : vector<1x128xf32> to vector<256x128xf32>
    %25 = arith.addf %22, %24 : vector<256x128xf32>
    %cst_17 = arith.constant -2.000000e+01 : f32
    %cst_18 = arith.constant 2.000000e+00 : f32
    %26 = vector.broadcast %cst_17 : f32 to vector<256x128xf32>
    %27 = arith.maximumf %26, %25 : vector<256x128xf32>
    %28 = vector.broadcast %cst_18 : f32 to vector<256x128xf32>
    %29 = arith.minimumf %28, %27 : vector<256x128xf32>
    %30 = math.exp %29 : vector<256x128xf32>
    %31 = vector.shape_cast %2 : vector<1x128xi1> to vector<1x128xi1>
    %32 = vector.broadcast %31 : vector<1x128xi1> to vector<256x128xi1>
    %33 = arith.select %32, %30, %25 : vector<256x128xi1>, vector<256x128xf32>
    %c0_19 = arith.constant 0 : index
    %c0_20 = arith.constant 0 : index
    %34 = vector.load %arg8[%c0_19, %c0_20] : memref<256x128xf32, #tpu.memory_space<vmem>>, vector<256x128xf32>
    tpu.vector_store %arg8[%c0_19, %c0_20], %33 {strides = array<i32>} : memref<256x128xf32, #tpu.memory_space<vmem>>, vector<256x128xf32>,
    return
  }
  func.func @transform_0(%arg0: i32) -> (i32, i32) {
    %c0_i32 = arith.constant 0 : i32
    %c0_i32_0 = arith.constant 0 : i32
    return %arg0, %c0_i32 : i32, i32
  }
  func.func @transform_1(%arg0: i32) -> (i32, i32) {
    %c0_i32 = arith.constant 0 : i32
    %c0_i32_0 = arith.constant 0 : i32
    %c0_i32_1 = arith.constant 0 : i32
    return %c0_i32, %c0_i32_0 : i32, i32
  }
  func.func @transform_2(%arg0: i32) -> (i32, i32) {
    %c0_i32 = arith.constant 0 : i32
    %c0_i32_0 = arith.constant 0 : i32
    %c0_i32_1 = arith.constant 0 : i32
    return %c0_i32, %c0_i32_0 : i32, i32
  }
  func.func @transform_3(%arg0: i32) -> (i32, i32) {
    %c0_i32 = arith.constant 0 : i32
    %c0_i32_0 = arith.constant 0 : i32
    %c0_i32_1 = arith.constant 0 : i32
    return %c0_i32, %c0_i32_0 : i32, i32
  }
  func.func @transform_4(%arg0: i32) -> (i32, i32) {
    %c0_i32 = arith.constant 0 : i32
    %c0_i32_0 = arith.constant 0 : i32
    %c0_i32_1 = arith.constant 0 : i32
    return %c0_i32, %c0_i32_0 : i32, i32
  }
  func.func @transform_5(%arg0: i32) -> (i32, i32) {
    %c0_i32 = arith.constant 0 : i32
    %c0_i32_0 = arith.constant 0 : i32
    %c0_i32_1 = arith.constant 0 : i32
    return %c0_i32, %c0_i32_0 : i32, i32
  }
  func.func @transform_6(%arg0: i32) -> (i32, i32) {
    %c0_i32 = arith.constant 0 : i32
    %c0_i32_0 = arith.constant 0 : i32
    %c0_i32_1 = arith.constant 0 : i32
    return %c0_i32, %c0_i32_0 : i32, i32
  }
  func.func @transform_7(%arg0: i32) -> (i32, i32) {
    %c0_i32 = arith.constant 0 : i32
    %c0_i32_0 = arith.constant 0 : i32
    return %arg0, %c0_i32 : i32, i32
  }
}

</mosaic_0001>

<llo_original>
// kernel: policy_net_forward.1
$region0: #{policy_net_forward.1}
  #allocation0 [shape = 'u32[]', space=smem, size = 0x4, offset = 0x4, fixed_abs, tag = 'smem constant byte address 0x4 - core index']
  #allocation1 [shape = 'u32[72,128]{1,0:T(1,128)}', space=vmem, size = 0x9000, scoped, tag = 'internal scratch']
  %s0 = inlined_call_operand.vmem [shape: f32[256,16], index: 0, kind: input, shape index: {}]
  %s1 = inlined_call_operand.vmem [shape: bf16[16,32], index: 1, kind: input, shape index: {}]
  %s2 = inlined_call_operand.vmem [shape: f32[1,32], index: 2, kind: input, shape index: {}]
  %s3 = inlined_call_operand.vmem [shape: bf16[32,32], index: 3, kind: input, shape index: {}]
  %s4 = inlined_call_operand.vmem [shape: f32[1,32], index: 4, kind: input, shape index: {}]
  %s5 = inlined_call_operand.vmem [shape: bf16[32,128], index: 5, kind: input, shape index: {}]
  %s6 = inlined_call_operand.vmem [shape: f32[1,128], index: 6, kind: input, shape index: {}]
  %s7 = inlined_call_operand.vmem [shape: f32[256,128], index: 7, kind: output, shape index: {}]
  %s8 = sld [smem:[#allocation0]]
  $region38: #{policy_net_forward.1} parent=0
    _
  %s10 = ssub.s32 1, %s8
  %s11 = scalar_select 0, %s10, %s8
  // Predicated region
  $region2: #{policy_net_forward.1} parent=0 // pred_check
    _
  $region3: #{policy_net_forward.1} parent=0 // pred_check_branch
    %13 = sbr.rel (0) target = $region5
  $region4: #{policy_net_forward.1} parent=0 // pred_region
    _
  $region5: #{policy_net_forward.1} parent=0 // pred_fallthru
    _
  // Predicated region
  $region6: #{policy_net_forward.1} parent=0 // pred_check
    _
  $region7: #{policy_net_forward.1} parent=0 // pred_check_branch
    %15 = sbr.rel (0) target = $region9
  $region8: #{policy_net_forward.1} parent=0 // pred_region
    _
  $region9: #{policy_net_forward.1} parent=0 // pred_fallthru
    _
  // Predicated region
  $region10: #{policy_net_forward.1} parent=0 // pred_check
    _
  $region11: #{policy_net_forward.1} parent=0 // pred_check_branch
    %17 = sbr.rel (0) target = $region13
  $region12: #{policy_net_forward.1} parent=0 // pred_region
    _
  $region13: #{policy_net_forward.1} parent=0 // pred_fallthru
    _
  // Predicated region
  $region14: #{policy_net_forward.1} parent=0 // pred_check
    _
  $region15: #{policy_net_forward.1} parent=0 // pred_check_branch
    %19 = sbr.rel (0) target = $region17
  $region16: #{policy_net_forward.1} parent=0 // pred_region
    _
  $region17: #{policy_net_forward.1} parent=0 // pred_fallthru
    _
  // Predicated region
  $region18: #{policy_net_forward.1} parent=0 // pred_check
    _
  $region19: #{policy_net_forward.1} parent=0 // pred_check_branch
    %21 = sbr.rel (0) target = $region21
  $region20: #{policy_net_forward.1} parent=0 // pred_region
    _
  $region21: #{policy_net_forward.1} parent=0 // pred_fallthru
    _
  // Predicated region
  $region22: #{policy_net_forward.1} parent=0 // pred_check
    _
  $region23: #{policy_net_forward.1} parent=0 // pred_check_branch
    %23 = sbr.rel (0) target = $region25
  $region24: #{policy_net_forward.1} parent=0 // pred_region
    _
  $region25: #{policy_net_forward.1} parent=0 // pred_fallthru
    _
  // Predicated region
  $region26: #{policy_net_forward.1} parent=0 // pred_check
    _
  $region27: #{policy_net_forward.1} parent=0 // pred_check_branch
    %25 = sbr.rel (0) target = $region29
  $region28: #{policy_net_forward.1} parent=0 // pred_region
    _
  $region29: #{policy_net_forward.1} parent=0 // pred_fallthru
    _
  %v27 = vlaneseq
  %v28 = vand.u32 %v27, 127
  %vm29 = vcmp.ge.s32.totalorder %v28, 64
  %v30 = vld [vmem:[%s0] sm:$0xff]
  %v31 = vld [vmem:[%s0 + $0x8] sm:$0xff]
  %v32 = vld [vmem:[%s0 + $0x10] sm:$0xff]
  %v33 = vld [vmem:[%s0 + $0x18] sm:$0xff]
  %v34 = vld [vmem:[%s0 + $0x20] sm:$0xff]
  %v35 = vld [vmem:[%s0 + $0x28] sm:$0xff]
  %v36 = vld [vmem:[%s0 + $0x30] sm:$0xff]
  %v37 = vld [vmem:[%s0 + $0x38] sm:$0xff]
  %v38 = vld [vmem:[%s0 + $0x40] sm:$0xff]
  %v39 = vld [vmem:[%s0 + $0x48] sm:$0xff]
  %v40 = vld [vmem:[%s0 + $0x50] sm:$0xff]
  %v41 = vld [vmem:[%s0 + $0x58] sm:$0xff]
  %v42 = vld [vmem:[%s0 + $0x60] sm:$0xff]
  %v43 = vld [vmem:[%s0 + $0x68] sm:$0xff]
  %v44 = vld [vmem:[%s0 + $0x70] sm:$0xff]
  %v45 = vld [vmem:[%s0 + $0x78] sm:$0xff]
  %v46 = vld [vmem:[%s0 + $0x80] sm:$0xff]
  %v47 = vld [vmem:[%s0 + $0x88] sm:$0xff]
  %v48 = vld [vmem:[%s0 + $0x90] sm:$0xff]
  %v49 = vld [vmem:[%s0 + $0x98] sm:$0xff]
  %v50 = vld [vmem:[%s0 + $0xa0] sm:$0xff]
  %v51 = vld [vmem:[%s0 + $0xa8] sm:$0xff]
  %v52 = vld [vmem:[%s0 + $0xb0] sm:$0xff]
  %v53 = vld [vmem:[%s0 + $0xb8] sm:$0xff]
  %v54 = vld [vmem:[%s0 + $0xc0] sm:$0xff]
  %v55 = vld [vmem:[%s0 + $0xc8] sm:$0xff]
  %v56 = vld [vmem:[%s0 + $0xd0] sm:$0xff]
  %v57 = vld [vmem:[%s0 + $0xd8] sm:$0xff]
  %v58 = vld [vmem:[%s0 + $0xe0] sm:$0xff]
  %v59 = vld [vmem:[%s0 + $0xe8] sm:$0xff]
  %v60 = vld [vmem:[%s0 + $0xf0] sm:$0xff]
  %v61 = vld [vmem:[%s0 + $0xf8] sm:$0xff]
  %v62 = vpack.c.bf16 %v31, %v30
  %v63 = vpack.c.bf16 %v33, %v32
  %v64 = vpack.c.bf16 %v35, %v34
  %v65 = vpack.c.bf16 %v37, %v36
  %v66 = vpack.c.bf16 %v39, %v38
  %v67 = vpack.c.bf16 %v41, %v40
  %v68 = vpack.c.bf16 %v43, %v42
  %v69 = vpack.c.bf16 %v45, %v44
  %v70 = vpack.c.bf16 %v47, %v46
  %v71 = vpack.c.bf16 %v49, %v48
  %v72 = vpack.c.bf16 %v51, %v50
  %v73 = vpack.c.bf16 %v53, %v52
  %v74 = vpack.c.bf16 %v55, %v54
  %v75 = vpack.c.bf16 %v57, %v56
  %v76 = vpack.c.bf16 %v59, %v58
  %v77 = vpack.c.bf16 %v61, %v60
  %v78 = vld [vmem:[%s1] sm:$0xf]
  %v79 = vld [vmem:[%s1 + $0x4] sm:$0xf]
  %v80 = vld [vmem:[%s2] sm:$0x1]
  %v82 = vperm.slane %v80, 0
  %v86 = vunpack.c.l.b16 %v78
  %v87 = vunpack.c.l.b16 %v79
  %v88 = vpack.c.b16 %v87, %v86
  %vm90 = vcmask 130048
  %v92 = vsel %vm90, %v62, 0
  %v95 = vsel %vm90, %v63, 0
  %v98 = vsel %vm90, %v64, 0
  %v101 = vsel %vm90, %v65, 0
  %v104 = vsel %vm90, %v66, 0
  %v107 = vsel %vm90, %v67, 0
  %v110 = vsel %vm90, %v68, 0
  %v113 = vsel %vm90, %v69, 0
  %v116 = vsel %vm90, %v70, 0
  %v119 = vsel %vm90, %v71, 0
  %v122 = vsel %vm90, %v72, 0
  %v125 = vsel %vm90, %v73, 0
  %v128 = vsel %vm90, %v74, 0
  %v131 = vsel %vm90, %v75, 0
  %v134 = vsel %vm90, %v76, 0
  %v137 = vsel %vm90, %v77, 0
  %139 = vmatpush.bf16.msra.mxu0 0
  %140 = vmatpush.bf16.msra.mxu0 0
  %141 = vmatpush.bf16.msra.mxu0 0
  %142 = vmatpush.bf16.msra.mxu0 0
  %143 = vmatpush.bf16.msra.mxu0 0
  %144 = vmatpush.bf16.msra.mxu0 0
  %145 = vmatpush.bf16.msra.mxu0 0
  %146 = vmatpush.bf16.msra.mxu0 %v88
  %147 = vmatmul.bf16.gmra.mxu0 %v92
  %v148 = vpop.f32.mrf.mxu0
  %v149 = vadd.f32 %v82, %v148
  %v150 = vpop.f32.mrf.mxu0
  %v151 = vadd.f32 %v82, %v150
  %152 = vmatmul.bf16.gmra.mxu0 %v95
  %v153 = vpop.f32.mrf.mxu0
  %v154 = vadd.f32 %v82, %v153
  %v155 = vpop.f32.mrf.mxu0
  %v156 = vadd.f32 %v82, %v155
  %157 = vmatmul.bf16.gmra.mxu0 %v98
  %v158 = vpop.f32.mrf.mxu0
  %v159 = vadd.f32 %v82, %v158
  %v160 = vpop.f32.mrf.mxu0
  %v161 = vadd.f32 %v82, %v160
  %162 = vmatmul.bf16.gmra.mxu0 %v101
  %v163 = vpop.f32.mrf.mxu0
  %v164 = vadd.f32 %v82, %v163
  %v165 = vpop.f32.mrf.mxu0
  %v166 = vadd.f32 %v82, %v165
  %167 = vmatmul.bf16.gmra.mxu0 %v104
  %v168 = vpop.f32.mrf.mxu0
  %v169 = vadd.f32 %v82, %v168
  %v170 = vpop.f32.mrf.mxu0
  %v171 = vadd.f32 %v82, %v170
  %172 = vmatmul.bf16.gmra.mxu0 %v107
  %v173 = vpop.f32.mrf.mxu0
  %v174 = vadd.f32 %v82, %v173
  %v175 = vpop.f32.mrf.mxu0
  %v176 = vadd.f32 %v82, %v175
  %177 = vmatmul.bf16.gmra.mxu0 %v110
  %v178 = vpop.f32.mrf.mxu0
  %v179 = vadd.f32 %v82, %v178
  %v180 = vpop.f32.mrf.mxu0
  %v181 = vadd.f32 %v82, %v180
  %182 = vmatmul.bf16.gmra.mxu0 %v113
  %v183 = vpop.f32.mrf.mxu0
  %v184 = vadd.f32 %v82, %v183
  %v185 = vpop.f32.mrf.mxu0
  %v186 = vadd.f32 %v82, %v185
  %187 = vmatmul.bf16.gmra.mxu0 %v116
  %v188 = vpop.f32.mrf.mxu0
  %v189 = vadd.f32 %v82, %v188
  %v190 = vpop.f32.mrf.mxu0
  %v191 = vadd.f32 %v82, %v190
  %192 = vmatmul.bf16.gmra.mxu0 %v119
  %v193 = vpop.f32.mrf.mxu0
  %v194 = vadd.f32 %v82, %v193
  %v195 = vpop.f32.mrf.mxu0
  %v196 = vadd.f32 %v82, %v195
  %197 = vmatmul.bf16.gmra.mxu0 %v122
  %v198 = vpop.f32.mrf.mxu0
  %v199 = vadd.f32 %v82, %v198
  %v200 = vpop.f32.mrf.mxu0
  %v201 = vadd.f32 %v82, %v200
  %202 = vmatmul.bf16.gmra.mxu0 %v125
  %v203 = vpop.f32.mrf.mxu0
  %v204 = vadd.f32 %v82, %v203
  %v205 = vpop.f32.mrf.mxu0
  %v206 = vadd.f32 %v82, %v205
  %207 = vmatmul.bf16.gmra.mxu0 %v128
  %v208 = vpop.f32.mrf.mxu0
  %v209 = vadd.f32 %v82, %v208
  %v210 = vpop.f32.mrf.mxu0
  %v211 = vadd.f32 %v82, %v210
  %212 = vmatmul.bf16.gmra.mxu0 %v131
  %v213 = vpop.f32.mrf.mxu0
  %v214 = vadd.f32 %v82, %v213
  %v215 = vpop.f32.mrf.mxu0
  %v216 = vadd.f32 %v82, %v215
  %217 = vmatmul.bf16.gmra.mxu0 %v134
  %v218 = vpop.f32.mrf.mxu0
  %v219 = vadd.f32 %v82, %v218
  %v220 = vpop.f32.mrf.mxu0
  %v221 = vadd.f32 %v82, %v220
  %222 = vmatmul.bf16.gmra.mxu0 %v137
  %v223 = vpop.f32.mrf.mxu0
  %v224 = vadd.f32 %v82, %v223
  %v225 = vpop.f32.mrf.mxu0
  %v226 = vadd.f32 %v82, %v225
  %227 = vdwg.mxu0
  %v228 = vmax.f32 %v149, 0.0
  %v229 = vmax.f32 %v151, 0.0
  %v230 = vmax.f32 %v154, 0.0
  %v231 = vmax.f32 %v156, 0.0
  %v232 = vmax.f32 %v159, 0.0
  %v233 = vmax.f32 %v161, 0.0
  %v234 = vmax.f32 %v164, 0.0
  %v235 = vmax.f32 %v166, 0.0
  %v236 = vmax.f32 %v169, 0.0
  %v237 = vmax.f32 %v171, 0.0
  %v238 = vmax.f32 %v174, 0.0
  %v239 = vmax.f32 %v176, 0.0
  %v240 = vmax.f32 %v179, 0.0
  %v241 = vmax.f32 %v181, 0.0
  %v242 = vmax.f32 %v184, 0.0
  %v243 = vmax.f32 %v186, 0.0
  %v244 = vmax.f32 %v189, 0.0
  %v245 = vmax.f32 %v191, 0.0
  %v246 = vmax.f32 %v194, 0.0
  %v247 = vmax.f32 %v196, 0.0
  %v248 = vmax.f32 %v199, 0.0
  %v249 = vmax.f32 %v201, 0.0
  %v250 = vmax.f32 %v204, 0.0
  %v251 = vmax.f32 %v206, 0.0
  %v252 = vmax.f32 %v209, 0.0
  %v253 = vmax.f32 %v211, 0.0
  %v254 = vmax.f32 %v214, 0.0
  %v255 = vmax.f32 %v216, 0.0
  %v256 = vmax.f32 %v219, 0.0
  %v257 = vmax.f32 %v221, 0.0
  %v258 = vmax.f32 %v224, 0.0
  %v259 = vmax.f32 %v226, 0.0
  %v260 = vpack.c.bf16 %v229, %v228
  %v261 = vpack.c.bf16 %v231, %v230
  %v262 = vpack.c.bf16 %v233, %v232
  %v263 = vpack.c.bf16 %v235, %v234
  %v264 = vpack.c.bf16 %v237, %v236
  %v265 = vpack.c.bf16 %v239, %v238
  %v266 = vpack.c.bf16 %v241, %v240
  %v267 = vpack.c.bf16 %v243, %v242
  %v268 = vpack.c.bf16 %v245, %v244
  %v269 = vpack.c.bf16 %v247, %v246
  %v270 = vpack.c.bf16 %v249, %v248
  %v271 = vpack.c.bf16 %v251, %v250
  %v272 = vpack.c.bf16 %v253, %v252
  %v273 = vpack.c.bf16 %v255, %v254
  %v274 = vpack.c.bf16 %v257, %v256
  %v275 = vpack.c.bf16 %v259, %v258
  %v276 = vld [vmem:[%s3] sm:$0xf]
  %v277 = vld [vmem:[%s3 + $0x4] sm:$0xf]
  %v278 = vld [vmem:[%s3 + $0x8] sm:$0xf]
  %v279 = vld [vmem:[%s3 + $0xc] sm:$0xf]
  %v280 = vld [vmem:[%s4] sm:$0x1]
  %v282 = vperm.slane %v280, 0
  %v288 = vunpack.c.l.b16 %v276
  %v289 = vunpack.c.l.b16 %v277
  %v290 = vunpack.c.l.b16 %v278
  %v291 = vunpack.c.l.b16 %v279
  %v292 = vpack.c.b16 %v289, %v288
  %v293 = vpack.c.b16 %v291, %v290
  %vm296 = vcmask 261120
  %v298 = vsel %vm296, %v260, 0
  %v301 = vsel %vm296, %v261, 0
  %v304 = vsel %vm296, %v262, 0
  %v307 = vsel %vm296, %v263, 0
  %v310 = vsel %vm296, %v264, 0
  %v313 = vsel %vm296, %v265, 0
  %v316 = vsel %vm296, %v266, 0
  %v319 = vsel %vm296, %v267, 0
  %v322 = vsel %vm296, %v268, 0
  %v325 = vsel %vm296, %v269, 0
  %v328 = vsel %vm296, %v270, 0
  %v331 = vsel %vm296, %v271, 0
  %v334 = vsel %vm296, %v272, 0
  %v337 = vsel %vm296, %v273, 0
  %v340 = vsel %vm296, %v274, 0
  %v343 = vsel %vm296, %v275, 0
  %345 = vmatpush.bf16.msra.mxu0 0
  %346 = vmatpush.bf16.msra.mxu0 0
  %347 = vmatpush.bf16.msra.mxu0 0
  %348 = vmatpush.bf16.msra.mxu0 0
  %349 = vmatpush.bf16.msra.mxu0 0
  %350 = vmatpush.bf16.msra.mxu0 0
  %351 = vmatpush.bf16.msra.mxu0 %v293
  %352 = vmatpush.bf16.msra.mxu0 %v292
  %353 = vmatmul.bf16.gmra.mxu0 %v298
  %v354 = vpop.f32.mrf.mxu0
  %v355 = vadd.f32 %v282, %v354
  %v356 = vpop.f32.mrf.mxu0
  %v357 = vadd.f32 %v282, %v356
  %358 = vmatmul.bf16.gmra.mxu0 %v301
  %v359 = vpop.f32.mrf.mxu0
  %v360 = vadd.f32 %v282, %v359
  %v361 = vpop.f32.mrf.mxu0
  %v362 = vadd.f32 %v282, %v361
  %363 = vmatmul.bf16.gmra.mxu0 %v304
  %v364 = vpop.f32.mrf.mxu0
  %v365 = vadd.f32 %v282, %v364
  %v366 = vpop.f32.mrf.mxu0
  %v367 = vadd.f32 %v282, %v366
  %368 = vmatmul.bf16.gmra.mxu0 %v307
  %v369 = vpop.f32.mrf.mxu0
  %v370 = vadd.f32 %v282, %v369
  %v371 = vpop.f32.mrf.mxu0
  %v372 = vadd.f32 %v282, %v371
  %373 = vmatmul.bf16.gmra.mxu0 %v310
  %v374 = vpop.f32.mrf.mxu0
  %v375 = vadd.f32 %v282, %v374
  %v376 = vpop.f32.mrf.mxu0
  %v377 = vadd.f32 %v282, %v376
  %378 = vmatmul.bf16.gmra.mxu0 %v313
  %v379 = vpop.f32.mrf.mxu0
  %v380 = vadd.f32 %v282, %v379
  %v381 = vpop.f32.mrf.mxu0
  %v382 = vadd.f32 %v282, %v381
  %383 = vmatmul.bf16.gmra.mxu0 %v316
  %v384 = vpop.f32.mrf.mxu0
  %v385 = vadd.f32 %v282, %v384
  %v386 = vpop.f32.mrf.mxu0
  %v387 = vadd.f32 %v282, %v386
  %388 = vmatmul.bf16.gmra.mxu0 %v319
  %v389 = vpop.f32.mrf.mxu0
  %v390 = vadd.f32 %v282, %v389
  %v391 = vpop.f32.mrf.mxu0
  %v392 = vadd.f32 %v282, %v391
  %393 = vmatmul.bf16.gmra.mxu0 %v322
  %v394 = vpop.f32.mrf.mxu0
  %v395 = vadd.f32 %v282, %v394
  %v396 = vpop.f32.mrf.mxu0
  %v397 = vadd.f32 %v282, %v396
  %398 = vmatmul.bf16.gmra.mxu0 %v325
  %v399 = vpop.f32.mrf.mxu0
  %v400 = vadd.f32 %v282, %v399
  %v401 = vpop.f32.mrf.mxu0
  %v402 = vadd.f32 %v282, %v401
  %403 = vmatmul.bf16.gmra.mxu0 %v328
  %v404 = vpop.f32.mrf.mxu0
  %v405 = vadd.f32 %v282, %v404
  %v406 = vpop.f32.mrf.mxu0
  %v407 = vadd.f32 %v282, %v406
  %408 = vmatmul.bf16.gmra.mxu0 %v331
  %v409 = vpop.f32.mrf.mxu0
  %v410 = vadd.f32 %v282, %v409
  %v411 = vpop.f32.mrf.mxu0
  %v412 = vadd.f32 %v282, %v411
  %413 = vmatmul.bf16.gmra.mxu0 %v334
  %v414 = vpop.f32.mrf.mxu0
  %v415 = vadd.f32 %v282, %v414
  %v416 = vpop.f32.mrf.mxu0
  %v417 = vadd.f32 %v282, %v416
  %418 = vmatmul.bf16.gmra.mxu0 %v337
  %v419 = vpop.f32.mrf.mxu0
  %v420 = vadd.f32 %v282, %v419
  %v421 = vpop.f32.mrf.mxu0
  %v422 = vadd.f32 %v282, %v421
  %423 = vmatmul.bf16.gmra.mxu0 %v340
  %v424 = vpop.f32.mrf.mxu0
  %v425 = vadd.f32 %v282, %v424
  %v426 = vpop.f32.mrf.mxu0
  %v427 = vadd.f32 %v282, %v426
  %428 = vmatmul.bf16.gmra.mxu0 %v343
  %v429 = vpop.f32.mrf.mxu0
  %v430 = vadd.f32 %v282, %v429
  %v431 = vpop.f32.mrf.mxu0
  %v432 = vadd.f32 %v282, %v431
  %433 = vdwg.mxu0
  %v434 = vmax.f32 %v355, 0.0
  %v435 = vmax.f32 %v357, 0.0
  %v436 = vmax.f32 %v360, 0.0
  %v437 = vmax.f32 %v362, 0.0
  %v438 = vmax.f32 %v365, 0.0
  %v439 = vmax.f32 %v367, 0.0
  %v440 = vmax.f32 %v370, 0.0
  %v441 = vmax.f32 %v372, 0.0
  %v442 = vmax.f32 %v375, 0.0
  %v443 = vmax.f32 %v377, 0.0
  %v444 = vmax.f32 %v380, 0.0
  %v445 = vmax.f32 %v382, 0.0
  %v446 = vmax.f32 %v385, 0.0
  %v447 = vmax.f32 %v387, 0.0
  %v448 = vmax.f32 %v390, 0.0
  %v449 = vmax.f32 %v392, 0.0
  %v450 = vmax.f32 %v395, 0.0
  %v451 = vmax.f32 %v397, 0.0
  %v452 = vmax.f32 %v400, 0.0
  %v453 = vmax.f32 %v402, 0.0
  %v454 = vmax.f32 %v405, 0.0
  %v455 = vmax.f32 %v407, 0.0
  %v456 = vmax.f32 %v410, 0.0
  %v457 = vmax.f32 %v412, 0.0
  %v458 = vmax.f32 %v415, 0.0
  %v459 = vmax.f32 %v417, 0.0
  %v460 = vmax.f32 %v420, 0.0
  %v461 = vmax.f32 %v422, 0.0
  %v462 = vmax.f32 %v425, 0.0
  %v463 = vmax.f32 %v427, 0.0
  %v464 = vmax.f32 %v430, 0.0
  %v465 = vmax.f32 %v432, 0.0
  %v466 = vpack.c.bf16 %v435, %v434
  %v467 = vpack.c.bf16 %v437, %v436
  %v468 = vpack.c.bf16 %v439, %v438
  %v469 = vpack.c.bf16 %v441, %v440
  %v470 = vpack.c.bf16 %v443, %v442
  %v471 = vpack.c.bf16 %v445, %v444
  %v472 = vpack.c.bf16 %v447, %v446
  %v473 = vpack.c.bf16 %v449, %v448
  %v474 = vpack.c.bf16 %v451, %v450
  %v475 = vpack.c.bf16 %v453, %v452
  %v476 = vpack.c.bf16 %v455, %v454
  %v477 = vpack.c.bf16 %v457, %v456
  %v478 = vpack.c.bf16 %v459, %v458
  %v479 = vpack.c.bf16 %v461, %v460
  %v480 = vpack.c.bf16 %v463, %v462
  %v481 = vpack.c.bf16 %v465, %v464
  %v482 = vld [vmem:[%s5] sm:$0xf]
  %v483 = vld [vmem:[%s5 + $0x4] sm:$0xf]
  %v484 = vld [vmem:[%s5 + $0x8] sm:$0xf]
  %v485 = vld [vmem:[%s5 + $0xc] sm:$0xf]
  %v486 = vld [vmem:[%s6] sm:$0x1]
  %v488 = vperm.slane %v486, 0
  %v494 = vunpack.c.l.b16 %v482
  %v495 = vunpack.c.l.b16 %v483
  %v496 = vunpack.c.l.b16 %v484
  %v497 = vunpack.c.l.b16 %v485
  %v498 = vpack.c.b16 %v495, %v494
  %v499 = vpack.c.b16 %v497, %v496
  %v503 = vsel %vm296, %v466, 0
  %v506 = vsel %vm296, %v467, 0
  %v509 = vsel %vm296, %v468, 0
  %v512 = vsel %vm296, %v469, 0
  %v515 = vsel %vm296, %v470, 0
  %v518 = vsel %vm296, %v471, 0
  %v521 = vsel %vm296, %v472, 0
  %v524 = vsel %vm296, %v473, 0
  %v527 = vsel %vm296, %v474, 0
  %v530 = vsel %vm296, %v475, 0
  %v533 = vsel %vm296, %v476, 0
  %v536 = vsel %vm296, %v477, 0
  %v539 = vsel %vm296, %v478, 0
  %v542 = vsel %vm296, %v479, 0
  %v545 = vsel %vm296, %v480, 0
  %v548 = vsel %vm296, %v481, 0
  %550 = vmatpush.bf16.msra.mxu0 0
  %551 = vmatpush.bf16.msra.mxu0 0
  %552 = vmatpush.bf16.msra.mxu0 0
  %553 = vmatpush.bf16.msra.mxu0 0
  %554 = vmatpush.bf16.msra.mxu0 0
  %555 = vmatpush.bf16.msra.mxu0 0
  %556 = vmatpush.bf16.msra.mxu0 %v499
  %557 = vmatpush.bf16.msra.mxu0 %v498
  %558 = vmatmul.bf16.gmra.mxu0 %v503
  %v559 = vpop.f32.mrf.mxu0
  %v560 = vadd.f32 %v488, %v559
  %v561 = vpop.f32.mrf.mxu0
  %v562 = vadd.f32 %v488, %v561
  %563 = vmatmul.bf16.gmra.mxu0 %v506
  %v564 = vpop.f32.mrf.mxu0
  %v565 = vadd.f32 %v488, %v564
  %v566 = vpop.f32.mrf.mxu0
  %v567 = vadd.f32 %v488, %v566
  %568 = vmatmul.bf16.gmra.mxu0 %v509
  %v569 = vpop.f32.mrf.mxu0
  %v570 = vadd.f32 %v488, %v569
  %v571 = vpop.f32.mrf.mxu0
  %v572 = vadd.f32 %v488, %v571
  %573 = vmatmul.bf16.gmra.mxu0 %v512
  %v574 = vpop.f32.mrf.mxu0
  %v575 = vadd.f32 %v488, %v574
  %v576 = vpop.f32.mrf.mxu0
  %v577 = vadd.f32 %v488, %v576
  %578 = vmatmul.bf16.gmra.mxu0 %v515
  %v579 = vpop.f32.mrf.mxu0
  %v580 = vadd.f32 %v488, %v579
  %v581 = vpop.f32.mrf.mxu0
  %v582 = vadd.f32 %v488, %v581
  %583 = vmatmul.bf16.gmra.mxu0 %v518
  %v584 = vpop.f32.mrf.mxu0
  %v585 = vadd.f32 %v488, %v584
  %v586 = vpop.f32.mrf.mxu0
  %v587 = vadd.f32 %v488, %v586
  %588 = vmatmul.bf16.gmra.mxu0 %v521
  %v589 = vpop.f32.mrf.mxu0
  %v590 = vadd.f32 %v488, %v589
  %v591 = vpop.f32.mrf.mxu0
  %v592 = vadd.f32 %v488, %v591
  %593 = vmatmul.bf16.gmra.mxu0 %v524
  %v594 = vpop.f32.mrf.mxu0
  %v595 = vadd.f32 %v488, %v594
  %v596 = vpop.f32.mrf.mxu0
  %v597 = vadd.f32 %v488, %v596
  %598 = vmatmul.bf16.gmra.mxu0 %v527
  %v599 = vpop.f32.mrf.mxu0
  %v600 = vadd.f32 %v488, %v599
  %v601 = vpop.f32.mrf.mxu0
  %v602 = vadd.f32 %v488, %v601
  %603 = vmatmul.bf16.gmra.mxu0 %v530
  %v604 = vpop.f32.mrf.mxu0
  %v605 = vadd.f32 %v488, %v604
  %v606 = vpop.f32.mrf.mxu0
  %v607 = vadd.f32 %v488, %v606
  %608 = vmatmul.bf16.gmra.mxu0 %v533
  %v609 = vpop.f32.mrf.mxu0
  %v610 = vadd.f32 %v488, %v609
  %v611 = vpop.f32.mrf.mxu0
  %v612 = vadd.f32 %v488, %v611
  %613 = vmatmul.bf16.gmra.mxu0 %v536
  %v614 = vpop.f32.mrf.mxu0
  %v615 = vadd.f32 %v488, %v614
  %v616 = vpop.f32.mrf.mxu0
  %v617 = vadd.f32 %v488, %v616
  %618 = vmatmul.bf16.gmra.mxu0 %v539
  %v619 = vpop.f32.mrf.mxu0
  %v620 = vadd.f32 %v488, %v619
  %v621 = vpop.f32.mrf.mxu0
  %v622 = vadd.f32 %v488, %v621
  %623 = vmatmul.bf16.gmra.mxu0 %v542
  %v624 = vpop.f32.mrf.mxu0
  %v625 = vadd.f32 %v488, %v624
  %v626 = vpop.f32.mrf.mxu0
  %v627 = vadd.f32 %v488, %v626
  %628 = vmatmul.bf16.gmra.mxu0 %v545
  %v629 = vpop.f32.mrf.mxu0
  %v630 = vadd.f32 %v488, %v629
  %v631 = vpop.f32.mrf.mxu0
  %v632 = vadd.f32 %v488, %v631
  %633 = vmatmul.bf16.gmra.mxu0 %v548
  %v634 = vpop.f32.mrf.mxu0
  %v635 = vadd.f32 %v488, %v634
  %v636 = vpop.f32.mrf.mxu0
  %v637 = vadd.f32 %v488, %v636
  %638 = vdwg.mxu0
  %v639 = vmax.f32 %v560, -20.0
  %v640 = vmax.f32 %v562, -20.0
  %v641 = vmax.f32 %v565, -20.0
  %v642 = vmax.f32 %v567, -20.0
  %v643 = vmax.f32 %v570, -20.0
  %v644 = vmax.f32 %v572, -20.0
  %v645 = vmax.f32 %v575, -20.0
  %v646 = vmax.f32 %v577, -20.0
  %v647 = vmax.f32 %v580, -20.0
  %v648 = vmax.f32 %v582, -20.0
  %v649 = vmax.f32 %v585, -20.0
  %v650 = vmax.f32 %v587, -20.0
  %v651 = vmax.f32 %v590, -20.0
  %v652 = vmax.f32 %v592, -20.0
  %v653 = vmax.f32 %v595, -20.0
  %v654 = vmax.f32 %v597, -20.0
  %v655 = vmax.f32 %v600, -20.0
  %v656 = vmax.f32 %v602, -20.0
  %v657 = vmax.f32 %v605, -20.0
  %v658 = vmax.f32 %v607, -20.0
  %v659 = vmax.f32 %v610, -20.0
  %v660 = vmax.f32 %v612, -20.0
  %v661 = vmax.f32 %v615, -20.0
  %v662 = vmax.f32 %v617, -20.0
  %v663 = vmax.f32 %v620, -20.0
  %v664 = vmax.f32 %v622, -20.0
  %v665 = vmax.f32 %v625, -20.0
  %v666 = vmax.f32 %v627, -20.0
  %v667 = vmax.f32 %v630, -20.0
  %v668 = vmax.f32 %v632, -20.0
  %v669 = vmax.f32 %v635, -20.0
  %v670 = vmax.f32 %v637, -20.0
  %v671 = vmin.f32 %v639, 2.0
  %v672 = vmin.f32 %v640, 2.0
  %v673 = vmin.f32 %v641, 2.0
  %v674 = vmin.f32 %v642, 2.0
  %v675 = vmin.f32 %v643, 2.0
  %v676 = vmin.f32 %v644, 2.0
  %v677 = vmin.f32 %v645, 2.0
  %v678 = vmin.f32 %v646, 2.0
  %v679 = vmin.f32 %v647, 2.0
  %v680 = vmin.f32 %v648, 2.0
  %v681 = vmin.f32 %v649, 2.0
  %v682 = vmin.f32 %v650, 2.0
  %v683 = vmin.f32 %v651, 2.0
  %v684 = vmin.f32 %v652, 2.0
  %v685 = vmin.f32 %v653, 2.0
  %v686 = vmin.f32 %v654, 2.0
  %v687 = vmin.f32 %v655, 2.0
  %v688 = vmin.f32 %v656, 2.0
  %v689 = vmin.f32 %v657, 2.0
  %v690 = vmin.f32 %v658, 2.0
  %v691 = vmin.f32 %v659, 2.0
  %v692 = vmin.f32 %v660, 2.0
  %v693 = vmin.f32 %v661, 2.0
  %v694 = vmin.f32 %v662, 2.0
  %v695 = vmin.f32 %v663, 2.0
  %v696 = vmin.f32 %v664, 2.0
  %v697 = vmin.f32 %v665, 2.0
  %v698 = vmin.f32 %v666, 2.0
  %v699 = vmin.f32 %v667, 2.0
  %v700 = vmin.f32 %v668, 2.0
  %v701 = vmin.f32 %v669, 2.0
  %v702 = vmin.f32 %v670, 2.0
  %v703 = vmul.f32 %v671, 1.442695
  %v704 = vpow.pop %v703
  %v705 = vmul.f32 %v672, 1.442695
  %v706 = vpow.pop %v705
  %v707 = vmul.f32 %v673, 1.442695
  %v708 = vpow.pop %v707
  %v709 = vmul.f32 %v674, 1.442695
  %v710 = vpow.pop %v709
  %v711 = vmul.f32 %v675, 1.442695
  %v712 = vpow.pop %v711
  %v713 = vmul.f32 %v676, 1.442695
  %v714 = vpow.pop %v713
  %v715 = vmul.f32 %v677, 1.442695
  %v716 = vpow.pop %v715
  %v717 = vmul.f32 %v678, 1.442695
  %v718 = vpow.pop %v717
  %v719 = vmul.f32 %v679, 1.442695
  %v720 = vpow.pop %v719
  %v721 = vmul.f32 %v680, 1.442695
  %v722 = vpow.pop %v721
  %v723 = vmul.f32 %v681, 1.442695
  %v724 = vpow.pop %v723
  %v725 = vmul.f32 %v682, 1.442695
  %v726 = vpow.pop %v725
  %v727 = vmul.f32 %v683, 1.442695
  %v728 = vpow.pop %v727
  %v729 = vmul.f32 %v684, 1.442695
  %v730 = vpow.pop %v729
  %v731 = vmul.f32 %v685, 1.442695
  %v732 = vpow.pop %v731
  %v733 = vmul.f32 %v686, 1.442695
  %v734 = vpow.pop %v733
  %v735 = vmul.f32 %v687, 1.442695
  %v736 = vpow.pop %v735
  %v737 = vmul.f32 %v688, 1.442695
  %v738 = vpow.pop %v737
  %v739 = vmul.f32 %v689, 1.442695
  %v740 = vpow.pop %v739
  %v741 = vmul.f32 %v690, 1.442695
  %v742 = vpow.pop %v741
  %v743 = vmul.f32 %v691, 1.442695
  %v744 = vpow.pop %v743
  %v745 = vmul.f32 %v692, 1.442695
  %v746 = vpow.pop %v745
  %v747 = vmul.f32 %v693, 1.442695
  %v748 = vpow.pop %v747
  %v749 = vmul.f32 %v694, 1.442695
  %v750 = vpow.pop %v749
  %v751 = vmul.f32 %v695, 1.442695
  %v752 = vpow.pop %v751
  %v753 = vmul.f32 %v696, 1.442695
  %v754 = vpow.pop %v753
  %v755 = vmul.f32 %v697, 1.442695
  %v756 = vpow.pop %v755
  %v757 = vmul.f32 %v698, 1.442695
  %v758 = vpow.pop %v757
  %v759 = vmul.f32 %v699, 1.442695
  %v760 = vpow.pop %v759
  %v761 = vmul.f32 %v700, 1.442695
  %v762 = vpow.pop %v761
  %v763 = vmul.f32 %v701, 1.442695
  %v764 = vpow.pop %v763
  %v765 = vmul.f32 %v702, 1.442695
  %v766 = vpow.pop %v765
  %v767 = vsel %vm29, 1, 0
  %vm768 = vcmp.eq.s32.totalorder %v767, 1
  %v769 = vsel %vm768, %v704, %v560
  %v770 = vsel %vm768, %v706, %v562
  %v771 = vsel %vm768, %v708, %v565
  %v772 = vsel %vm768, %v710, %v567
  %v773 = vsel %vm768, %v712, %v570
  %v774 = vsel %vm768, %v714, %v572
  %v775 = vsel %vm768, %v716, %v575
  %v776 = vsel %vm768, %v718, %v577
  %v777 = vsel %vm768, %v720, %v580
  %v778 = vsel %vm768, %v722, %v582
  %v779 = vsel %vm768, %v724, %v585
  %v780 = vsel %vm768, %v726, %v587
  %v781 = vsel %vm768, %v728, %v590
  %v782 = vsel %vm768, %v730, %v592
  %v783 = vsel %vm768, %v732, %v595
  %v784 = vsel %vm768, %v734, %v597
  %v785 = vsel %vm768, %v736, %v600
  %v786 = vsel %vm768, %v738, %v602
  %v787 = vsel %vm768, %v740, %v605
  %v788 = vsel %vm768, %v742, %v607
  %v789 = vsel %vm768, %v744, %v610
  %v790 = vsel %vm768, %v746, %v612
  %v791 = vsel %vm768, %v748, %v615
  %v792 = vsel %vm768, %v750, %v617
  %v793 = vsel %vm768, %v752, %v620
  %v794 = vsel %vm768, %v754, %v622
  %v795 = vsel %vm768, %v756, %v625
  %v796 = vsel %vm768, %v758, %v627
  %v797 = vsel %vm768, %v760, %v630
  %v798 = vsel %vm768, %v762, %v632
  %v799 = vsel %vm768, %v764, %v635
  %v800 = vsel %vm768, %v766, %v637
  %801 = vst [vmem:[%s7] sm:$0xff] %v769
  %802 = vst [vmem:[%s7 + $0x8] sm:$0xff] %v770
  %803 = vst [vmem:[%s7 + $0x10] sm:$0xff] %v771
  %804 = vst [vmem:[%s7 + $0x18] sm:$0xff] %v772
  %805 = vst [vmem:[%s7 + $0x20] sm:$0xff] %v773
  %806 = vst [vmem:[%s7 + $0x28] sm:$0xff] %v774
  %807 = vst [vmem:[%s7 + $0x30] sm:$0xff] %v775
  %808 = vst [vmem:[%s7 + $0x38] sm:$0xff] %v776
  %809 = vst [vmem:[%s7 + $0x40] sm:$0xff] %v777
  %810 = vst [vmem:[%s7 + $0x48] sm:$0xff] %v778
  %811 = vst [vmem:[%s7 + $0x50] sm:$0xff] %v779
  %812 = vst [vmem:[%s7 + $0x58] sm:$0xff] %v780
  %813 = vst [vmem:[%s7 + $0x60] sm:$0xff] %v781
  %814 = vst [vmem:[%s7 + $0x68] sm:$0xff] %v782
  %815 = vst [vmem:[%s7 + $0x70] sm:$0xff] %v783
  %816 = vst [vmem:[%s7 + $0x78] sm:$0xff] %v784
  %817 = vst [vmem:[%s7 + $0x80] sm:$0xff] %v785
  %818 = vst [vmem:[%s7 + $0x88] sm:$0xff] %v786
  %819 = vst [vmem:[%s7 + $0x90] sm:$0xff] %v787
  %820 = vst [vmem:[%s7 + $0x98] sm:$0xff] %v788
  %821 = vst [vmem:[%s7 + $0xa0] sm:$0xff] %v789
  %822 = vst [vmem:[%s7 + $0xa8] sm:$0xff] %v790
  %823 = vst [vmem:[%s7 + $0xb0] sm:$0xff] %v791
  %824 = vst [vmem:[%s7 + $0xb8] sm:$0xff] %v792
  %825 = vst [vmem:[%s7 + $0xc0] sm:$0xff] %v793
  %826 = vst [vmem:[%s7 + $0xc8] sm:$0xff] %v794
  %827 = vst [vmem:[%s7 + $0xd0] sm:$0xff] %v795
  %828 = vst [vmem:[%s7 + $0xd8] sm:$0xff] %v796
  %829 = vst [vmem:[%s7 + $0xe0] sm:$0xff] %v797
  %830 = vst [vmem:[%s7 + $0xe8] sm:$0xff] %v798
  %831 = vst [vmem:[%s7 + $0xf0] sm:$0xff] %v799
  %832 = vst [vmem:[%s7 + $0xf8] sm:$0xff] %v800
  // Predicated region
  $region30: #{policy_net_forward.1} parent=0 // pred_check
    _
  $region31: #{policy_net_forward.1} parent=0 // pred_check_branch
    %834 = sbr.rel (0) target = $region33
  $region32: #{policy_net_forward.1} parent=0 // pred_region
    _
  $region33: #{policy_net_forward.1} parent=0 // pred_fallthru
    _
  // Predicated region
  $region34: #{policy_net_forward.1} parent=0 // pred_check
    _
  $region35: #{policy_net_forward.1} parent=0 // pred_check_branch
    %836 = sbr.rel (0) target = $region37
  $region36: #{policy_net_forward.1} parent=0 // pred_region
    _
  $region37: #{policy_net_forward.1} parent=0 // pred_fallthru
    _

</llo_original>
